<compile_context>
chip_gen: v7x
topology: tpu7x:2x2x1
jax: 0.10.0
libtpu: 0.0.40
codegen_flags: <defaults>
</compile_context>

<pallas_src>
import jax
import jax.numpy as jnp
from jax.experimental import pallas as pl
from jax.experimental.pallas import tpu as pltpu

_NEG_BIG = 1e30  # large finite (not -inf) so masked rows stay NaN/inf-free


def splade_head_kernel(h_ref, am_ref, w_ref, b_ref, o_ref):
    # h_ref:  (Bt, L, H)   hidden states, bf16
    # am_ref: (Bt, L, 1)   additive attention mask (0 / -1e30), f32
    # w_ref:  (H, TV)      MLM head weight tile, bf16
    # b_ref:  (1, TV)      MLM head bias tile, f32
    # o_ref:  (Bt, TV)     pooled sparse-embedding tile, f32
    Bt, L, H = h_ref.shape
    TV = w_ref.shape[1]
    # One fat (Bt*L, H) x (H, TV) MXU matmul with f32 accumulation; the
    # weight tile is shared by the whole batch block.
    h = h_ref[...].reshape(Bt * L, H)
    logits = jnp.dot(h, w_ref[...], preferred_element_type=jnp.float32)
    # Additive mask (0 for real tokens, -1e30 for padding): one VPU add and
    # masked positions can never win the max.
    masked = logits + am_ref[...].reshape(Bt * L, 1)
    # Max-pool over the sequence FIRST.  relu/log1p are monotone and
    # log1p(relu(.)) >= 0, so bias + relu + log1p hoist past the max:
    #   max_L(log1p(relu(xW+b))*m) == log1p(relu(max_L(xW + addmask) + b)).
    pooled = jnp.max(masked.reshape(Bt, L, TV), axis=1)        # (Bt, TV)
    pooled = pooled + b_ref[...]                               # (Bt, TV)
    o_ref[...] = jnp.log1p(jnp.maximum(pooled, 0.0))


def splade_head(hidden, attention_mask, w_mlm, b_mlm, *, tv=1024, bt=8):
    """SPLADE pooling head: max_L( log(1+relu(h @ W + b)) * mask )."""
    B, L, H = hidden.shape
    V = w_mlm.shape[1]

    # --- tile sizes (lane / MXU friendly) -------------------------------
    tv = min(tv, pl.cdiv(V, 128) * 128)
    tv = max((tv // 128) * 128, 128)
    Vp = pl.cdiv(V, tv) * tv                      # vocab padded to tile mult.
    bt = min(bt, B)
    Bp = pl.cdiv(B, bt) * bt                      # batch padded to bt mult.
    Lp = pl.cdiv(L, 16) * 16                      # bf16 sublane packing

    # --- dtype / padding plumbing (wrapper side, cheap) -----------------
    # bf16 for the two dominant HBM streams (weight + hidden); bias, mask and
    # all accumulation / activation math stay f32.
    h_bf16 = hidden.astype(jnp.bfloat16)
    if Bp != B or Lp != L:
        h_bf16 = jnp.pad(h_bf16, ((0, Bp - B), (0, Lp - L), (0, 0)))
    mask01 = attention_mask.astype(jnp.float32)
    if Bp != B or Lp != L:
        mask01 = jnp.pad(mask01, ((0, Bp - B), (0, Lp - L)))   # pads are 0
    add_mask = ((mask01 - 1.0) * _NEG_BIG).reshape(Bp, Lp, 1)  # 0 or -1e30

    w_bf16 = w_mlm.astype(jnp.bfloat16)
    bias2 = b_mlm.astype(jnp.float32).reshape(1, V)
    if Vp != V:
        w_bf16 = jnp.pad(w_bf16, ((0, 0), (0, Vp - V)))
        bias2 = jnp.pad(bias2, ((0, 0), (0, Vp - V)))

    num_b = Bp // bt
    num_v = Vp // tv

    # --- advisory cost model for XLA's scheduler ------------------------
    cost = pl.CostEstimate(
        flops=2 * Bp * Lp * H * Vp,
        transcendentals=Bp * Vp,                       # log1p on pooled only
        bytes_accessed=(Bp * Lp * H * 2                # hidden streamed once
                        + Bp * Lp * 4                  # mask once
                        + num_b * H * Vp * 2           # weight per batch block
                        + num_b * Vp * 4               # bias per batch block
                        + Bp * Vp * 4))                # output

    # --- VMEM budget: double-buffered tiles + f32 matmul intermediates ---
    per_step = (2 * (bt * Lp * H * 2)        # hidden block, bf16, 2 buffers
                + 2 * (bt * Lp * 4)          # additive mask block, f32
                + 2 * (H * tv * 2)           # weight tile, bf16, 2 buffers
                + 2 * (tv * 4)               # bias tile
                + 2 * (bt * tv * 4)          # output tile
                + 2 * (bt * Lp * tv * 4))    # logits + masked f32 values
    vmem_limit = int(min(max(per_step + per_step // 4, 16 << 20), 64 << 20))

    out = pl.pallas_call(
        splade_head_kernel,
        out_shape=jax.ShapeDtypeStruct((Bp, Vp), jnp.float32),
        grid_spec=pltpu.PrefetchScalarGridSpec(
            num_scalar_prefetch=0,
            # Batch block on the OUTER axis: hidden/mask index_maps depend
            # only on b, so the (bt, Lp, H) hidden block stays resident for
            # the whole inner vocab sweep and crosses HBM exactly once.
            grid=(num_b, num_v),
            in_specs=[
                pl.BlockSpec((bt, Lp, H), lambda b, v: (b, 0, 0)),
                pl.BlockSpec((bt, Lp, 1), lambda b, v: (b, 0, 0)),
                pl.BlockSpec((H, tv), lambda b, v: (0, v)),
                pl.BlockSpec((1, tv), lambda b, v: (0, v)),
            ],
            out_specs=pl.BlockSpec((bt, tv), lambda b, v: (b, v)),
        ),
        compiler_params=pltpu.CompilerParams(
            dimension_semantics=("parallel", "parallel"),
            vmem_limit_bytes=vmem_limit),
        cost_estimate=cost,
    )(h_bf16, add_mask, w_bf16, bias2)
    return out[:B, :V]


def init_splade_params(key, vocab, hidden):
    """Deterministic synthetic SPLADE model parameters."""
    k1, k2, k3, k4, k5 = jax.random.split(key, 5)
    return {
        "emb":   0.02 * jax.random.normal(k1, (vocab, hidden), jnp.float32),
        "w_enc": 0.05 * jax.random.normal(k2, (hidden, hidden), jnp.float32),
        "b_enc": 0.01 * jax.random.normal(k3, (hidden,), jnp.float32),
        "w_mlm": 0.05 * jax.random.normal(k4, (hidden, vocab), jnp.float32),
        "b_mlm": 0.01 * jax.random.normal(k5, (vocab,), jnp.float32),
    }


def splade_model_forward(params, input_ids, attention_mask):
    # Glue (plain JAX): embedding lookup + tiny dense encoder layer.
    h = params["emb"][input_ids]                              # (B, L, H)
    h = jnp.tanh(h @ params["w_enc"] + params["b_enc"])       # (B, L, H)
    # Hot path (Pallas): MLM vocab projection + SPLADE pooling.
    return splade_head(h, attention_mask, params["w_mlm"], params["b_mlm"])


def st_splade_forward(params, features):
    """Equivalent of ST_SPLADEModule.forward: returns the features dict with
    'sentence_embedding' added."""
    # TODO(synk): tokenizer / .to(device) / ModelOutput-type dispatch are
    # host-side plumbing with no kernel equivalent; inputs are already arrays.
    out = splade_model_forward(
        params, features["input_ids"], features["attention_mask"])
    new_features = dict(features)
    new_features["sentence_embedding"] = out
    return new_features


if __name__ == "__main__":
    B, L, H, V = 2, 16, 32, 256  # small shapes: batch, seq, hidden, vocab

    key = jax.random.PRNGKey(0)
    kp, kid = jax.random.split(key)
    params = init_splade_params(kp, V, H)

    input_ids = jax.random.randint(kid, (B, L), 0, V, dtype=jnp.int32)
    # second sequence has two padded positions
    attention_mask = jnp.array(
        [[1] * L, [1] * (L - 2) + [0, 0]], dtype=jnp.int32)

    features = {"input_ids": input_ids, "attention_mask": attention_mask}
    out_features = st_splade_forward(params, features)
    emb = jax.block_until_ready(out_features["sentence_embedding"])

    # Pure-JAX reference of the Pallas head, in the ORIGINAL (un-hoisted)
    # formulation, matching the kernel's bf16 weight/hidden streams and f32
    # accumulation.
    h = jnp.tanh(params["emb"][input_ids] @ params["w_enc"] + params["b_enc"])
    ref_logits = jnp.dot(h.astype(jnp.bfloat16),
                         params["w_mlm"].astype(jnp.bfloat16),
                         preferred_element_type=jnp.float32) + params["b_mlm"]
    ref = jnp.max(
        jnp.log1p(jnp.maximum(ref_logits, 0.0))
        * attention_mask.astype(jnp.float32)[:, :, None],
        axis=1)
    assert emb.shape == (B, V)
    assert jnp.allclose(emb, ref, atol=2e-3, rtol=2e-3), (
        float(jnp.max(jnp.abs(emb - ref))))

    print("KERNEL_OK")
</pallas_src>

<mosaic_0001>
module attributes {stable_mosaic.version = 11 : i64} {
  func.func @splade_head_kernel(%arg0: i32, %arg1: i32, %arg2: memref<2x16x32xbf16, #tpu.memory_space<vmem>>, %arg3: memref<2x16x1xf32, #tpu.memory_space<vmem>>, %arg4: memref<32x256xbf16, #tpu.memory_space<vmem>>, %arg5: memref<1x256xf32, #tpu.memory_space<vmem>>, %arg6: memref<2x256xf32, #tpu.memory_space<vmem>>) attributes {dimension_semantics = [#tpu.dimension_semantics<parallel>, #tpu.dimension_semantics<parallel>], iteration_bounds = array<i64: 1, 1>, scalar_prefetch = 0 : i64, scratch_operands = 0 : i64, tpu.core_type = #tpu.core_type<tc>, window_params = [{transform_indices = @transform_0, window_bounds = array<i64: 2, 16, 32>}, {transform_indices = @transform_1, window_bounds = array<i64: 2, 16, 1>}, {transform_indices = @transform_2, window_bounds = array<i64: 32, 256>}, {transform_indices = @transform_3, window_bounds = array<i64: 1, 256>}, {transform_indices = @transform_4, window_bounds = array<i64: 2, 256>}]} {
    %c0 = arith.constant 0 : index
    %c0_0 = arith.constant 0 : index
    %c0_1 = arith.constant 0 : index
    %0 = vector.load %arg2[%c0, %c0_0, %c0_1] : memref<2x16x32xbf16, #tpu.memory_space<vmem>>, vector<2x16x32xbf16>
    %1 = vector.shape_cast %0 : vector<2x16x32xbf16> to vector<32x32xbf16>
    %c0_2 = arith.constant 0 : index
    %c0_3 = arith.constant 0 : index
    %2 = vector.load %arg4[%c0_2, %c0_3] : memref<32x256xbf16, #tpu.memory_space<vmem>>, vector<32x256xbf16>
    %cst = arith.constant dense<0.000000e+00> : vector<32x256xf32>
    %3 = tpu.matmul %1, %2, %cst {dimension_numbers = #tpu.dot_dimension_numbers<[1], [0], [0], [1], [0, 0, 1, 1], [], []>} : vector<32x32xbf16>, vector<32x256xbf16>, vector<32x256xf32> -> vector<32x256xf32>
    %c0_4 = arith.constant 0 : index
    %c0_5 = arith.constant 0 : index
    %c0_6 = arith.constant 0 : index
    %4 = vector.load %arg3[%c0_4, %c0_5, %c0_6] : memref<2x16x1xf32, #tpu.memory_space<vmem>>, vector<2x16x1xf32>
    %5 = vector.shape_cast %4 : vector<2x16x1xf32> to vector<32x1xf32>
    %6 = vector.broadcast %5 : vector<32x1xf32> to vector<32x256xf32>
    %7 = arith.addf %3, %6 : vector<32x256xf32>
    %8 = vector.shape_cast %7 : vector<32x256xf32> to vector<2x16x256xf32>
    %cst_7 = arith.constant dense<0xFF800000> : vector<2x256xf32>
    %9 = vector.multi_reduction <maximumf>, %8, %cst_7 [1] : vector<2x16x256xf32> to vector<2x256xf32>
    %c0_8 = arith.constant 0 : index
    %c0_9 = arith.constant 0 : index
    %10 = vector.load %arg5[%c0_8, %c0_9] : memref<1x256xf32, #tpu.memory_space<vmem>>, vector<1x256xf32>
    %11 = vector.broadcast %10 : vector<1x256xf32> to vector<2x256xf32>
    %12 = arith.addf %9, %11 : vector<2x256xf32>
    %cst_10 = arith.constant 0.000000e+00 : f32
    %13 = vector.broadcast %cst_10 : f32 to vector<2x256xf32>
    %14 = arith.maximumf %12, %13 : vector<2x256xf32>
    %15 = math.log1p %14 : vector<2x256xf32>
    %c0_11 = arith.constant 0 : index
    %c0_12 = arith.constant 0 : index
    %16 = vector.load %arg6[%c0_11, %c0_12] : memref<2x256xf32, #tpu.memory_space<vmem>>, vector<2x256xf32>
    tpu.vector_store %arg6[%c0_11, %c0_12], %15 {strides = array<i32>} : memref<2x256xf32, #tpu.memory_space<vmem>>, vector<2x256xf32>,
    return
  }
  func.func @transform_0(%arg0: i32, %arg1: i32) -> (i32, i32, i32) {
    %c0_i32 = arith.constant 0 : i32
    %c0_i32_0 = arith.constant 0 : i32
    %c0_i32_1 = arith.constant 0 : i32
    return %arg0, %c0_i32, %c0_i32_0 : i32, i32, i32
  }
  func.func @transform_1(%arg0: i32, %arg1: i32) -> (i32, i32, i32) {
    %c0_i32 = arith.constant 0 : i32
    %c0_i32_0 = arith.constant 0 : i32
    %c0_i32_1 = arith.constant 0 : i32
    return %arg0, %c0_i32, %c0_i32_0 : i32, i32, i32
  }
  func.func @transform_2(%arg0: i32, %arg1: i32) -> (i32, i32) {
    %c0_i32 = arith.constant 0 : i32
    %c0_i32_0 = arith.constant 0 : i32
    return %c0_i32, %arg1 : i32, i32
  }
  func.func @transform_3(%arg0: i32, %arg1: i32) -> (i32, i32) {
    %c0_i32 = arith.constant 0 : i32
    %c0_i32_0 = arith.constant 0 : i32
    return %c0_i32, %arg1 : i32, i32
  }
  func.func @transform_4(%arg0: i32, %arg1: i32) -> (i32, i32) {
    %c0_i32 = arith.constant 0 : i32
    return %arg0, %arg1 : i32, i32
  }
}

</mosaic_0001>

<llo_original>
// kernel: tpu_custom_call.1
$region0: #{tpu_custom_call.1}
  #allocation0 [shape = 'u32[]', space=smem, size = 0x4, offset = 0x4, fixed_abs, tag = 'smem constant byte address 0x4 - core index']
  #allocation1 [shape = 'u32[144,128]{1,0:T(1,128)}', space=vmem, size = 0x12000, scoped, tag = 'internal scratch']
  %s0 = inlined_call_operand.hbm [shape: bf16[2,16,32], index: 0, kind: input, shape index: {}]
  %s1 = inlined_call_operand.vmem [shape: f32[2,16,1], index: 1, kind: input, shape index: {}]
  %s2 = inlined_call_operand.vmem [shape: bf16[32,256], index: 2, kind: input, shape index: {}]
  %s3 = inlined_call_operand.vmem [shape: f32[1,256], index: 3, kind: input, shape index: {}]
  %s4 = inlined_call_operand.hbm [shape: f32[2,256], index: 4, kind: output, shape index: {}]
  %s5 = sld [smem:[#allocation0]]
  $region30: #{tpu_custom_call.1} parent=0
    _
  %s7 = ssub.s32 1, %s5
  %s8 = scalar_select 0, %s7, %s5
  $region1: #{tpu_custom_call.1} parent=0
    #allocation2 [shape = 'u8[8192]{0}', space=vmem, size = 0x2000, scoped, tag = 'input window, operand 0, single buffered']
    #allocation3 [shape = 's32[1]{0}', space=sflag, size = 0x4, scoped, tag = 'scoped memory for tpu_custom_call.1']
    #allocation4 [shape = 's32[1]{0}', space=sflag, size = 0x4, scoped, tag = 'scoped memory for tpu_custom_call.1']
    #allocation5 [shape = 'u8[2048]{0}', space=vmem, size = 0x800, scoped, tag = 'output window, operand 0, single buffered']
    %9 = vsyncpa [#allocation3], 0
    %10 = vsyncpa [#allocation4], 0
    // Predicated region
    $region2: #{tpu_custom_call.1} parent=1 // pred_check
      _
    $region3: #{tpu_custom_call.1} parent=1 // pred_check_branch
      %12 = sbr.rel (0) target = $region5
    $region4: #{tpu_custom_call.1} parent=1 // pred_region
      %s14 = ssub.s32 256, 256
      %15 = vsyncadd [#allocation3], %s14
      %s16 = sshll.u32 [#allocation2], 4
      %s17 = int_to_ptr.vmem [resolvable:$true] %s16
      %22 = dma.hbm_to_vmem [thread:$0]  %s0, 256, %s17, [#allocation3], 64, 64, 4
    $region5: #{tpu_custom_call.1} parent=1 // pred_fallthru
      _
    // Predicated region
    $region6: #{tpu_custom_call.1} parent=1 // pred_check
      _
    $region7: #{tpu_custom_call.1} parent=1 // pred_check_branch
      %24 = sbr.rel (0) target = $region9
    $region8: #{tpu_custom_call.1} parent=1 // pred_region
      _
    $region9: #{tpu_custom_call.1} parent=1 // pred_fallthru
      _
    // Predicated region
    $region10: #{tpu_custom_call.1} parent=1 // pred_check
      _
    $region11: #{tpu_custom_call.1} parent=1 // pred_check_branch
      %26 = sbr.rel (0) target = $region13
    $region12: #{tpu_custom_call.1} parent=1 // pred_region
      _
    $region13: #{tpu_custom_call.1} parent=1 // pred_fallthru
      _
    // Predicated region
    $region14: #{tpu_custom_call.1} parent=1 // pred_check
      _
    $region15: #{tpu_custom_call.1} parent=1 // pred_check_branch
      %28 = sbr.rel (0) target = $region17
    $region16: #{tpu_custom_call.1} parent=1 // pred_region
      _
    $region17: #{tpu_custom_call.1} parent=1 // pred_fallthru
      _
    // Predicated region
    $region18: #{tpu_custom_call.1} parent=1 // pred_check
      _
    $region19: #{tpu_custom_call.1} parent=1 // pred_check_branch
      %30 = sbr.rel (0) target = $region21
    $region20: #{tpu_custom_call.1} parent=1 // pred_region
      %31 = dma.done [#allocation3], 256
    $region21: #{tpu_custom_call.1} parent=1 // pred_fallthru
      _
    %v33 = vld [vmem:[#allocation2] sm:$0xf]
    %v34 = vld [vmem:[#allocation2 + $0x4] sm:$0xf]
    %v35 = vld [vmem:[#allocation2 + $0x8] sm:$0xf]
    %v36 = vld [vmem:[#allocation2 + $0xc] sm:$0xf]
    %v37 = vld [vmem:[%s2] sm:$0xff]
    %v38 = vld [vmem:[%s2 + $0x8] sm:$0xff]
    %v39 = vld [vmem:[%s2 + $0x10] sm:$0xff]
    %v40 = vld [vmem:[%s2 + $0x18] sm:$0xff]
    %v41 = vld [vmem:[%s1] sm:$0xff]
    %v42 = vld [vmem:[%s1 + $0x8] sm:$0xff]
    %v43 = vld [vmem:[%s1 + $0x10] sm:$0xff]
    %v44 = vld [vmem:[%s1 + $0x18] sm:$0xff]
    %46 = vset.pattern.permute.xlu0 0
    %47 = vperm.xlu0 %46, %v41
    %v48 = vpop.permute.xlu0 %47
    %51 = vset.pattern.permute.xlu0 0
    %52 = vperm.xlu0 %51, %v42
    %v53 = vpop.permute.xlu0 %52
    %56 = vset.pattern.permute.xlu0 0
    %57 = vperm.xlu0 %56, %v43
    %v58 = vpop.permute.xlu0 %57
    %61 = vset.pattern.permute.xlu0 0
    %62 = vperm.xlu0 %61, %v44
    %v63 = vpop.permute.xlu0 %62
    %v69 = vunpack.c.l.b16 %v33
    %v70 = vunpack.c.l.b16 %v34
    %v71 = vunpack.c.l.b16 %v35
    %v72 = vunpack.c.l.b16 %v36
    %v73 = vpack.c.b16 %v70, %v69
    %v74 = vpack.c.b16 %v72, %v71
    %v79 = vunpack.c.l.b16 %v37
    %v80 = vunpack.c.h.b16 %v37
    %v81 = vunpack.c.l.b16 %v38
    %v82 = vunpack.c.h.b16 %v38
    %v83 = vunpack.c.l.b16 %v39
    %v84 = vunpack.c.h.b16 %v39
    %v85 = vunpack.c.l.b16 %v40
    %v86 = vunpack.c.h.b16 %v40
    %v87 = vpack.c.b16 %v81, %v79
    %v88 = vpack.c.b16 %v82, %v80
    %v89 = vpack.c.b16 %v85, %v83
    %v90 = vpack.c.b16 %v86, %v84
    %vm95 = vcmask 261120
    %v97 = vsel %vm95, %v73, 0
    %v100 = vsel %vm95, %v74, 0
    %102 = vmatprep.subr.bf16.mxu0 %v88
    %103 = vmatpush1.bf16.msra.mxu0 %v87
    %104 = vmatprep.subr.bf16.mxu0 %v90
    %105 = vmatpush1.bf16.msra.mxu0 %v89
    %106 = vmatprep.subr.bf16.mxu0 0
    %107 = vmatpush1.bf16.msra.mxu0 0
    %108 = vmatprep.subr.bf16.mxu0 0
    %109 = vmatpush1.bf16.msra.mxu0 0
    %110 = vmatprep.subr.bf16.mxu0 0
    %111 = vmatpush1.bf16.msra.mxu0 0
    %112 = vmatprep.subr.bf16.mxu0 0
    %113 = vmatpush1.bf16.msra.mxu0 0
    %114 = vmatprep.subr.bf16.mxu0 0
    %115 = vmatpush1.bf16.msra.mxu0 0
    %116 = vmatprep.subr.bf16.mxu0 0
    %117 = vmatpush1.bf16.msra.mxu0 0
    %118 = vmatprep.subr.bf16.mxu0 0
    %119 = vmatpush1.bf16.msra.mxu0 0
    %120 = vmatprep.subr.bf16.mxu0 0
    %121 = vmatpush1.bf16.msra.mxu0 0
    %122 = vmatprep.subr.bf16.mxu0 0
    %123 = vmatpush1.bf16.msra.mxu0 0
    %124 = vmatprep.subr.bf16.mxu0 0
    %125 = vmatpush1.bf16.msra.mxu0 0
    %126 = vmatprep.subr.bf16.mxu0 0
    %127 = vmatpush1.bf16.msra.mxu0 0
    %128 = vmatprep.subr.bf16.mxu0 0
    %129 = vmatpush1.bf16.msra.mxu0 0
    %130 = vmatprep.subr.bf16.mxu0 0
    %131 = vmatpush1.bf16.msra.mxu0 0
    %132 = vmatprep.subr.bf16.mxu0 0
    %133 = vmatpush1.bf16.msra.mxu0 0
    %134 = vmatprep.mubr.bf16.mxu0 0
    %135 = vmatmul.mubr.bf16.gmra.mrb[0].mxu0 %v97
    %v136 = vpop.f32.mrb[0].mxu0
    %v137 = vadd.f32 %v48, %v136
    %v138 = vpop.f32.mrb[0].mxu0
    %v139 = vadd.f32 %v48, %v138
    %v140 = vpop.f32.mrb[0].mxu0
    %v141 = vadd.f32 %v53, %v140
    %v142 = vpop.f32.mrb[0].mxu0
    %v143 = vadd.f32 %v53, %v142
    %144 = vmatprep.mubr.bf16.mxu0 0
    %145 = vmatmul.mubr.bf16.gmra.mrb[0].mxu0 %v100
    %v146 = vpop.f32.mrb[0].mxu0
    %v147 = vadd.f32 %v58, %v146
    %v148 = vpop.f32.mrb[0].mxu0
    %v149 = vadd.f32 %v58, %v148
    %v150 = vpop.f32.mrb[0].mxu0
    %v151 = vadd.f32 %v63, %v150
    %v152 = vpop.f32.mrb[0].mxu0
    %v153 = vadd.f32 %v63, %v152
    %154 = vdwg.mxu0
    %v155 = vmax.f32 %v137, %v141
    %v156 = vrot.slane %v155, 4
    %v157 = vmax.f32 %v155, %v156
    %v158 = vrot.slane %v157, 2
    %v159 = vmax.f32 %v157, %v158
    %v160 = vrot.slane %v159, 1
    %v161 = vmax.f32 %v159, %v160
    %v162 = vmax.f32 %v139, %v143
    %v163 = vrot.slane %v162, 4
    %v164 = vmax.f32 %v162, %v163
    %v165 = vrot.slane %v164, 2
    %v166 = vmax.f32 %v164, %v165
    %v167 = vrot.slane %v166, 1
    %v168 = vmax.f32 %v166, %v167
    %v169 = vmax.f32 %v147, %v151
    %v170 = vrot.slane %v169, 4
    %v171 = vmax.f32 %v169, %v170
    %v172 = vrot.slane %v171, 2
    %v173 = vmax.f32 %v171, %v172
    %v174 = vrot.slane %v173, 1
    %v175 = vmax.f32 %v173, %v174
    %v176 = vmax.f32 %v149, %v153
    %v177 = vrot.slane %v176, 4
    %v178 = vmax.f32 %v176, %v177
    %v179 = vrot.slane %v178, 2
    %v180 = vmax.f32 %v178, %v179
    %v181 = vrot.slane %v180, 1
    %v182 = vmax.f32 %v180, %v181
    %v183 = vld [vmem:[%s3] sm:$0x3]
    %v185 = vlaneseq
    %v186 = vshrl.u32 %v185, 7
    %v187 = vsub.s32 0, %v186
    %v188 = vrot.slane %v183, %v187
    %v189 = vlaneseq
    %v190 = vshrl.u32 %v189, 7
    %v191 = vsub.s32 1, %v190
    %v192 = vrot.slane %v183, %v191
    %v195 = vadd.f32 %v161, %v188
    %v196 = vadd.f32 %v168, %v192
    %v197 = vadd.f32 %v175, %v188
    %v198 = vadd.f32 %v182, %v192
    %v199 = vmax.f32 %v195, 0.0
    %v200 = vmax.f32 %v196, 0.0
    %v201 = vmax.f32 %v197, 0.0
    %v202 = vmax.f32 %v198, 0.0
    %v203 = vadd.f32 %v199, 1.0
    %v204 = vlog2.pop %v203
    %v205 = vmul.f32 %v204, 0.6931472
    %v206 = vmul.f32 -0.5, %v199
    %v207 = vadd.f32 %v206, 1.0
    %v208 = vmul.f32 %v207, %v199
    %v209 = vand.u32 2147483647, %v199
    %vm210 = vcmp.lt.f32.partialorder %v209, 0.0004427343
    %v211 = vsel %vm210, %v208, %v205
    %v212 = vadd.f32 %v200, 1.0
    %v213 = vlog2.pop %v212
    %v214 = vmul.f32 %v213, 0.6931472
    %v215 = vmul.f32 -0.5, %v200
    %v216 = vadd.f32 %v215, 1.0
    %v217 = vmul.f32 %v216, %v200
    %v218 = vand.u32 2147483647, %v200
    %vm219 = vcmp.lt.f32.partialorder %v218, 0.0004427343
    %v220 = vsel %vm219, %v217, %v214
    %v221 = vadd.f32 %v201, 1.0
    %v222 = vlog2.pop %v221
    %v223 = vmul.f32 %v222, 0.6931472
    %v224 = vmul.f32 -0.5, %v201
    %v225 = vadd.f32 %v224, 1.0
    %v226 = vmul.f32 %v225, %v201
    %v227 = vand.u32 2147483647, %v201
    %vm228 = vcmp.lt.f32.partialorder %v227, 0.0004427343
    %v229 = vsel %vm228, %v226, %v223
    %v230 = vadd.f32 %v202, 1.0
    %v231 = vlog2.pop %v230
    %v232 = vmul.f32 %v231, 0.6931472
    %v233 = vmul.f32 -0.5, %v202
    %v234 = vadd.f32 %v233, 1.0
    %v235 = vmul.f32 %v234, %v202
    %v236 = vand.u32 2147483647, %v202
    %vm237 = vcmp.lt.f32.partialorder %v236, 0.0004427343
    %v238 = vsel %vm237, %v235, %v232
    %v243 = vcombine.low %v211, %v220
    %v245 = vunpack.c.l.s4 1983009808
    %v246 = vunpack.c.0.s8 %v245
    %v247 = vlaneseq
    %v248 = vshrl.u32 %v247, 7
    %v249 = vsub.s32 %v246, %v248
    %v250 = vrot.slane %v243, %v249
    %v251 = vcombine.low %v229, %v238
    %v253 = vunpack.c.l.s4 1983009808
    %v254 = vunpack.c.0.s8 %v253
    %v255 = vlaneseq
    %v256 = vshrl.u32 %v255, 7
    %v257 = vsub.s32 %v254, %v256
    %v258 = vrot.slane %v251, %v257
    %vm259 = vcmask 1044484
    %v260 = vsel %vm259, %v250, %v250
    %vm261 = vcmask 1046534
    %v262 = vsel %vm261, %v250, %v260
    %v263 = vrot.slane %v258, 7
    %vm264 = vcmask 1041409
    %v265 = vsel %vm264, %v263, %v262
    %vm266 = vcmask 1043459
    %v267 = vsel %vm266, %v263, %v265
    %vm268 = vcmask 1045509
    %v269 = vsel %vm268, %v263, %v267
    %vm270 = vcmask 1047559
    %v271 = vsel %vm270, %v263, %v269
    %273 = vst [vmem:[#allocation5] sm:$0xf] %v271
    // Predicated region
    $region22: #{tpu_custom_call.1} parent=1 // pred_check
      _
    $region23: #{tpu_custom_call.1} parent=1 // pred_check_branch
      %275 = sbr.rel (0) target = $region25
    $region24: #{tpu_custom_call.1} parent=1 // pred_region
      %s277 = ssub.s32 64, 64
      %278 = vsyncadd [#allocation4], %s277
      %s280 = sshll.u32 [#allocation5], 4
      %s281 = int_to_ptr.vmem [resolvable:$true] %s280
      %283 = dma.vmem_to_hbm [thread:$0]  %s281, 64, %s4, [#allocation4]
    $region25: #{tpu_custom_call.1} parent=1 // pred_fallthru
      _
    // Predicated region
    $region26: #{tpu_custom_call.1} parent=1 // pred_check
      _
    $region27: #{tpu_custom_call.1} parent=1 // pred_check_branch
      %285 = sbr.rel (0) target = $region29
    $region28: #{tpu_custom_call.1} parent=1 // pred_region
      %286 = dma.done [#allocation4], 64
    $region29: #{tpu_custom_call.1} parent=1 // pred_fallthru
      _
    %287 = vsyncpa [#allocation3], 1
    %288 = vsyncpa [#allocation4], 1

</llo_original>
